<compile_context>
chip_gen: v7x
topology: tpu7x:2x2x1
jax: 0.10.0
libtpu: 0.0.40
codegen_flags: <defaults>
</compile_context>

<pallas_src>
import math
from functools import partial

import jax
import jax.numpy as jnp
from jax.experimental import pallas as pl
from jax.experimental.pallas import tpu as pltpu

_GELU_C = math.sqrt(2.0 / math.pi)

# Conservative scoped-VMEM cap: fits v5e/v6e (128 MiB physical) and v7x
# (64 MiB physical, 32 MiB default scoped limit) with headroom for Mosaic.
_VMEM_CAP_BYTES = 48 * 1024 * 1024


def _round_up(x, m):
    return ((x + m - 1) // m) * m


def _pick_hidden_tile(hidden, desired, align=128):
    """Largest lane-aligned divisor of `hidden` <= desired (or `hidden` itself)."""
    if hidden <= desired:
        return hidden
    d = (desired // align) * align
    while d >= align:
        if hidden % d == 0:
            return d
        d -= align
    return hidden


def _vmem_estimate(tm, th, n_embd, hidden, itemsize, resident):
    """Rough VMEM footprint (bytes) of one pipelined step."""
    acc = tm * n_embd * 4                                  # f32 accumulator scratch
    interm = 2 * tm * th * 4 + tm * th * itemsize          # f32 h/g + bf16 g
    xio = 2 * 2 * tm * n_embd * itemsize                   # x + out tiles, double-buffered
    if resident:
        w = (2 * n_embd * hidden + hidden + n_embd) * itemsize   # single-buffered weights
        w += 2 * n_embd * th * itemsize                          # materialized k-slices
    else:
        w = 2 * (2 * n_embd * th + th) * itemsize + n_embd * itemsize  # double-buffered tiles
    return acc + interm + xio + w


def _shrink_tiles(tm, th, fits):
    while not fits(tm, th):
        if tm > 256:
            tm //= 2
        elif th > 256 and (th // 2) % 128 == 0:
            th //= 2
        else:
            break
    return tm, th


def _block_spec(shape, index_map, single_buffered=False):
    """BlockSpec helper; constant-index operands request a single buffer."""
    if single_buffered:
        try:
            return pl.BlockSpec(shape, index_map, pipeline_mode=pl.Buffered(1))
        except TypeError:   # very old jax without pipeline_mode: default buffering
            pass
    return pl.BlockSpec(shape, index_map)


def _mlp_kernel(x_ref, wfc_ref, bfc_ref, wproj_ref, bproj_ref, o_ref, acc_ref,
                *, resident):
    # x_ref: (tm, n_embd)   o_ref: (tm, n_embd)   acc_ref: (tm, n_embd) f32
    # resident: wfc (n_k, n_embd, th), bfc (n_k, 1, th), wproj (n_k, th, n_embd)
    # streamed: wfc (n_embd, th),      bfc (1, th),      wproj (th, n_embd)
    # bproj: (1, n_embd)
    k = pl.program_id(1)

    @pl.when(k == 0)
    def _init():
        acc_ref[...] = jnp.zeros_like(acc_ref)

    if resident:
        wfc = wfc_ref[k]        # (n_embd, th) — k-th hidden chunk, weights resident
        bfc = bfc_ref[k]        # (1, th)
        wproj = wproj_ref[k]    # (th, n_embd)
    else:
        wfc = wfc_ref[...]
        bfc = bfc_ref[...]
        wproj = wproj_ref[...]

    # c_fc chunk: MXU matmul in operand dtype (bf16 fast path), f32 accumulate.
    h = jnp.dot(x_ref[...], wfc, preferred_element_type=jnp.float32)
    h = h + bfc.astype(jnp.float32)

    # GELU, tanh approximation (matches torch.nn.GELU(approximate='tanh')).
    # tanh goes to the EUP slot; polynomial stays on the VPU.
    u = 0.5 * h
    t = jnp.tanh(_GELU_C * (h + 0.044715 * (h * h * h)))
    g = u + u * t

    # c_proj chunk: cast GELU output back to weight dtype (bf16 MXU path),
    # accumulate into the f32 VMEM scratch.
    acc_ref[...] += jnp.dot(g.astype(wproj.dtype), wproj,
                            preferred_element_type=jnp.float32)

    @pl.when(k == pl.num_programs(1) - 1)
    def _finalize():
        o_ref[...] = (acc_ref[...] + bproj_ref[...].astype(jnp.float32)
                      ).astype(o_ref.dtype)


def mlp_pallas(x, w_fc, b_fc, w_proj, b_proj, *, tm=1024, th=1024,
               compute_dtype=jnp.bfloat16):
    """x: [B, T, n_embd]; w_fc: [n_embd, 4n]; b_fc: [4n]; w_proj: [4n, n_embd]; b_proj: [n_embd].

    Weights use the transposed (in, out) layout of the PyTorch nn.Linear params.
    """
    B, T, n_embd = x.shape
    hidden = w_fc.shape[1]
    M = B * T
    out_dtype = x.dtype

    # MXU fast path guard: fp32 matmul operands run the MXU 4-8x slower, so
    # cast x / weights to bf16 here (f32 accumulation in-kernel is unchanged).
    cd = jnp.dtype(compute_dtype)
    x2 = x.reshape(M, n_embd)
    if jnp.issubdtype(x2.dtype, jnp.floating) and x2.dtype != cd:
        x2 = x2.astype(cd)
    if w_fc.dtype != cd:
        w_fc = w_fc.astype(cd)
    if w_proj.dtype != cd:
        w_proj = w_proj.astype(cd)
    itemsize = cd.itemsize

    # ---- tile selection -------------------------------------------------
    th = _pick_hidden_tile(hidden, th)
    m8 = _round_up(M, 8)
    tm = min(_round_up(tm, 8), m8)
    # v7x megacore: prefer >= 2 row tiles so both TensorCores get work.
    if _round_up(M, tm) // tm < 2 and m8 >= 16:
        tm = _round_up((m8 + 1) // 2, 8)

    budget = int(0.85 * _VMEM_CAP_BYTES)
    fits_res = lambda a, b: _vmem_estimate(a, b, n_embd, hidden, itemsize, True) <= budget
    tm_r, th_r = _shrink_tiles(tm, th, fits_res)
    if fits_res(tm_r, th_r):
        resident, tm, th = True, tm_r, th_r
    else:
        resident = False
        fits_str = lambda a, b: _vmem_estimate(a, b, n_embd, hidden, itemsize, False) <= budget
        tm, th = _shrink_tiles(tm, th, fits_str)
    assert hidden % th == 0 and tm % 8 == 0
    n_k = hidden // th

    # Pad rows up to a multiple of tm (padded rows are sliced off at the end).
    M_pad = _round_up(M, tm)
    if M_pad != M:
        x2 = jnp.pad(x2, ((0, M_pad - M), (0, 0)))

    bproj2 = b_proj.reshape(1, n_embd)

    if resident:
        # One-time relayout so the kernel indexes the k-th hidden chunk on a
        # leading axis (cheap XLA ops outside the kernel; callers that reuse
        # the weights should store them in this layout).
        wfc_arg = w_fc.reshape(n_embd, n_k, th).transpose(1, 0, 2)   # (n_k, n_embd, th)
        bfc_arg = b_fc.reshape(n_k, 1, th)                           # (n_k, 1, th)
        wproj_arg = w_proj.reshape(n_k, th, n_embd)                  # (n_k, th, n_embd)
        in_specs = [
            _block_spec((tm, n_embd), lambda i, k: (i, 0)),                          # x rows
            _block_spec((n_k, n_embd, th), lambda i, k: (0, 0, 0), True),            # W_fc resident
            _block_spec((n_k, 1, th), lambda i, k: (0, 0, 0), True),                 # b_fc resident
            _block_spec((n_k, th, n_embd), lambda i, k: (0, 0, 0), True),            # W_proj resident
            _block_spec((1, n_embd), lambda i, k: (0, 0), True),                     # b_proj
        ]
    else:
        wfc_arg = w_fc
        bfc_arg = b_fc.reshape(1, hidden)
        wproj_arg = w_proj
        in_specs = [
            _block_spec((tm, n_embd), lambda i, k: (i, 0)),                          # x rows
            _block_spec((n_embd, th), lambda i, k: (0, k)),                          # W_fc col tile
            _block_spec((1, th), lambda i, k: (0, k)),                               # b_fc tile
            _block_spec((th, n_embd), lambda i, k: (k, 0)),                          # W_proj row tile
            _block_spec((1, n_embd), lambda i, k: (0, 0), True),                     # b_proj
        ]

    # Real HBM traffic: x + output once; weights once (resident) or per row tile.
    weight_passes = 1 if resident else (M_pad // tm)
    weight_bytes = ((w_fc.size + w_proj.size) * itemsize
                    + b_fc.size * jnp.dtype(b_fc.dtype).itemsize
                    + b_proj.size * jnp.dtype(b_proj.dtype).itemsize)
    cost = pl.CostEstimate(
        flops=4 * M_pad * n_embd * hidden,
        transcendentals=M_pad * hidden,
        bytes_accessed=(x2.size * itemsize
                        + weight_passes * weight_bytes
                        + M_pad * n_embd * jnp.dtype(out_dtype).itemsize),
    )

    out2 = pl.pallas_call(
        partial(_mlp_kernel, resident=resident),
        out_shape=jax.ShapeDtypeStruct((M_pad, n_embd), out_dtype),
        grid_spec=pltpu.PrefetchScalarGridSpec(
            num_scalar_prefetch=0,
            grid=(M_pad // tm, n_k),
            in_specs=in_specs,
            out_specs=pl.BlockSpec((tm, n_embd), lambda i, k: (i, 0)),
            scratch_shapes=[pltpu.VMEM((tm, n_embd), jnp.float32)],
        ),
        compiler_params=pltpu.CompilerParams(
            dimension_semantics=("parallel", "arbitrary"),
            vmem_limit_bytes=_VMEM_CAP_BYTES,
        ),
        cost_estimate=cost,
    )(x2, wfc_arg, bfc_arg, wproj_arg, bproj2)

    return out2[:M].reshape(B, T, n_embd)


def mlp_reference(x, w_fc, b_fc, w_proj, b_proj):
    # Pure-JAX f32 reference (params upcast once).
    xf = x.astype(jnp.float32)
    h = jnp.einsum("btc,ch->bth", xf, w_fc.astype(jnp.float32)) + b_fc.astype(jnp.float32)
    g = 0.5 * h * (1.0 + jnp.tanh(_GELU_C * h * (1.0 + 0.044715 * (h * h))))
    y = jnp.einsum("bth,hc->btc", g, w_proj.astype(jnp.float32)) + b_proj.astype(jnp.float32)
    return y


if __name__ == "__main__":
    # Small GPT-2-style config: batch=2, seq=8, n_embd=128 -> hidden=512
    # (lane-dense output so the small test is layout-representative).
    B, T, n_embd = 2, 8, 128
    hidden = 4 * n_embd

    key = jax.random.PRNGKey(0)
    kx, kwfc, kbfc, kwproj, kbproj = jax.random.split(key, 5)

    # bf16 operands (MXU fast path) with f32 accumulation inside the kernel.
    x = jax.random.normal(kx, (B, T, n_embd), dtype=jnp.float32).astype(jnp.bfloat16)
    w_fc = (jax.random.normal(kwfc, (n_embd, hidden), dtype=jnp.float32)
            * (1.0 / math.sqrt(n_embd))).astype(jnp.bfloat16)
    b_fc = (jax.random.normal(kbfc, (hidden,), dtype=jnp.float32) * 0.01).astype(jnp.bfloat16)
    # c_proj carries NANOGPT_SCALE_INIT=1 in the module (train-time init scale only).
    w_proj = (jax.random.normal(kwproj, (hidden, n_embd), dtype=jnp.float32)
              * (1.0 / math.sqrt(hidden))).astype(jnp.bfloat16)
    b_proj = (jax.random.normal(kbproj, (n_embd,), dtype=jnp.float32) * 0.01).astype(jnp.bfloat16)

    y = mlp_pallas(x, w_fc, b_fc, w_proj, b_proj)
    y = jax.block_until_ready(y)

    y_ref = mlp_reference(x, w_fc, b_fc, w_proj, b_proj)
    assert y.shape == (B, T, n_embd)
    assert jnp.allclose(y.astype(jnp.float32), y_ref, atol=2e-2, rtol=2e-2), \
        "mismatch vs reference"

    print("KERNEL_OK")
</pallas_src>

<mosaic_0001>
module attributes {stable_mosaic.version = 11 : i64} {
  func.func @_mlp_kernel(%arg0: i32, %arg1: i32, %arg2: memref<8x128xbf16, #tpu.memory_space<vmem>>, %arg3: memref<1x128x512xbf16, #tpu.memory_space<vmem>>, %arg4: memref<1x1x512xbf16, #tpu.memory_space<vmem>>, %arg5: memref<1x512x128xbf16, #tpu.memory_space<vmem>>, %arg6: memref<1x128xbf16, #tpu.memory_space<vmem>>, %arg7: memref<8x128xbf16, #tpu.memory_space<vmem>>, %arg8: memref<8x128xf32, #tpu.memory_space<vmem>>) attributes {dimension_semantics = [#tpu.dimension_semantics<parallel>, #tpu.dimension_semantics<arbitrary>], iteration_bounds = array<i64: 2, 1>, scalar_prefetch = 0 : i64, scratch_operands = 1 : i64, tpu.core_type = #tpu.core_type<tc>, window_params = [{transform_indices = @transform_0, window_bounds = array<i64: 8, 128>}, {pipeline_mode = #tpu.pipeline_mode<synchronous>, transform_indices = @transform_1, window_bounds = array<i64: 1, 128, 512>}, {pipeline_mode = #tpu.pipeline_mode<synchronous>, transform_indices = @transform_2, window_bounds = array<i64: 1, 1, 512>}, {pipeline_mode = #tpu.pipeline_mode<synchronous>, transform_indices = @transform_3, window_bounds = array<i64: 1, 512, 128>}, {pipeline_mode = #tpu.pipeline_mode<synchronous>, transform_indices = @transform_4, window_bounds = array<i64: 1, 128>}, {transform_indices = @transform_5, window_bounds = array<i64: 8, 128>}]} {
    %c0_i32 = arith.constant 0 : i32
    %0 = arith.cmpi eq, %arg1, %c0_i32 : i32
    %1 = arith.extui %0 : i1 to i32
    %c0_i32_0 = arith.constant 0 : i32
    %2 = arith.cmpi ne, %1, %c0_i32_0 : i32
    scf.if %2 {
      %cst_18 = arith.constant 0.000000e+00 : f32
      %37 = vector.broadcast %cst_18 : f32 to vector<8x128xf32>
      %c0_19 = arith.constant 0 : index
      %c0_20 = arith.constant 0 : index
      %38 = vector.load %arg8[%c0_19, %c0_20] : memref<8x128xf32, #tpu.memory_space<vmem>>, vector<8x128xf32>
      tpu.vector_store %arg8[%c0_19, %c0_20], %37 {strides = array<i32>} : memref<8x128xf32, #tpu.memory_space<vmem>>, vector<8x128xf32>,
    } else {
    }
    %3 = arith.index_cast %arg1 : i32 to index
    %c0 = arith.constant 0 : index
    %c0_1 = arith.constant 0 : index
    %4 = vector.load %arg3[%3, %c0, %c0_1] : memref<1x128x512xbf16, #tpu.memory_space<vmem>>, vector<1x128x512xbf16>
    %5 = vector.shape_cast %4 : vector<1x128x512xbf16> to vector<128x512xbf16>
    %6 = arith.index_cast %arg1 : i32 to index
    %c0_2 = arith.constant 0 : index
    %c0_3 = arith.constant 0 : index
    %7 = vector.load %arg4[%6, %c0_2, %c0_3] : memref<1x1x512xbf16, #tpu.memory_space<vmem>>, vector<1x1x512xbf16>
    %8 = vector.shape_cast %7 : vector<1x1x512xbf16> to vector<1x512xbf16>
    %9 = arith.index_cast %arg1 : i32 to index
    %c0_4 = arith.constant 0 : index
    %c0_5 = arith.constant 0 : index
    %10 = vector.load %arg5[%9, %c0_4, %c0_5] : memref<1x512x128xbf16, #tpu.memory_space<vmem>>, vector<1x512x128xbf16>
    %11 = vector.shape_cast %10 : vector<1x512x128xbf16> to vector<512x128xbf16>
    %c0_6 = arith.constant 0 : index
    %c0_7 = arith.constant 0 : index
    %12 = vector.load %arg2[%c0_6, %c0_7] : memref<8x128xbf16, #tpu.memory_space<vmem>>, vector<8x128xbf16>
    %cst = arith.constant dense<0.000000e+00> : vector<8x512xf32>
    %13 = tpu.matmul %12, %5, %cst {dimension_numbers = #tpu.dot_dimension_numbers<[1], [0], [0], [1], [0, 0, 1, 1], [], []>} : vector<8x128xbf16>, vector<128x512xbf16>, vector<8x512xf32> -> vector<8x512xf32>
    %14 = arith.extf %8 : vector<1x512xbf16> to vector<1x512xf32>
    %15 = vector.broadcast %14 : vector<1x512xf32> to vector<8x512xf32>
    %16 = arith.addf %13, %15 : vector<8x512xf32>
    %cst_8 = arith.constant 5.000000e-01 : f32
    %17 = vector.broadcast %cst_8 : f32 to vector<8x512xf32>
    %18 = arith.mulf %17, %16 : vector<8x512xf32>
    %19 = arith.mulf %16, %16 : vector<8x512xf32>
    %20 = arith.mulf %19, %16 : vector<8x512xf32>
    %cst_9 = arith.constant 4.471500e-02 : f32
    %21 = vector.broadcast %cst_9 : f32 to vector<8x512xf32>
    %22 = arith.mulf %21, %20 : vector<8x512xf32>
    %23 = arith.addf %16, %22 : vector<8x512xf32>
    %cst_10 = arith.constant 0.797884583 : f32
    %24 = vector.broadcast %cst_10 : f32 to vector<8x512xf32>
    %25 = arith.mulf %24, %23 : vector<8x512xf32>
    %26 = math.tanh %25 : vector<8x512xf32>
    %27 = arith.mulf %18, %26 : vector<8x512xf32>
    %28 = arith.addf %18, %27 : vector<8x512xf32>
    %c0_11 = arith.constant 0 : index
    %c0_12 = arith.constant 0 : index
    %29 = vector.load %arg8[%c0_11, %c0_12] : memref<8x128xf32, #tpu.memory_space<vmem>>, vector<8x128xf32>
    %30 = arith.truncf %28 : vector<8x512xf32> to vector<8x512xbf16>
    %cst_13 = arith.constant dense<0.000000e+00> : vector<8x128xf32>
    %31 = tpu.matmul %30, %11, %cst_13 {dimension_numbers = #tpu.dot_dimension_numbers<[1], [0], [0], [1], [0, 0, 1, 1], [], []>} : vector<8x512xbf16>, vector<512x128xbf16>, vector<8x128xf32> -> vector<8x128xf32>
    %32 = arith.addf %29, %31 : vector<8x128xf32>
    %c0_14 = arith.constant 0 : index
    %c0_15 = arith.constant 0 : index
    %33 = vector.load %arg8[%c0_14, %c0_15] : memref<8x128xf32, #tpu.memory_space<vmem>>, vector<8x128xf32>
    tpu.vector_store %arg8[%c0_14, %c0_15], %32 {strides = array<i32>} : memref<8x128xf32, #tpu.memory_space<vmem>>, vector<8x128xf32>,
    %c0_i32_16 = arith.constant 0 : i32
    %34 = arith.cmpi eq, %arg1, %c0_i32_16 : i32
    %35 = arith.extui %34 : i1 to i32
    %c0_i32_17 = arith.constant 0 : i32
    %36 = arith.cmpi ne, %35, %c0_i32_17 : i32
    scf.if %36 {
      %c0_18 = arith.constant 0 : index
      %c0_19 = arith.constant 0 : index
      %37 = vector.load %arg8[%c0_18, %c0_19] : memref<8x128xf32, #tpu.memory_space<vmem>>, vector<8x128xf32>
      %c0_20 = arith.constant 0 : index
      %c0_21 = arith.constant 0 : index
      %38 = vector.load %arg6[%c0_20, %c0_21] : memref<1x128xbf16, #tpu.memory_space<vmem>>, vector<1x128xbf16>
      %39 = arith.extf %38 : vector<1x128xbf16> to vector<1x128xf32>
      %40 = vector.broadcast %39 : vector<1x128xf32> to vector<8x128xf32>
      %41 = arith.addf %37, %40 : vector<8x128xf32>
      %42 = arith.truncf %41 : vector<8x128xf32> to vector<8x128xbf16>
      %c0_22 = arith.constant 0 : index
      %c0_23 = arith.constant 0 : index
      %43 = vector.load %arg7[%c0_22, %c0_23] : memref<8x128xbf16, #tpu.memory_space<vmem>>, vector<8x128xbf16>
      tpu.vector_store %arg7[%c0_22, %c0_23], %42 {strides = array<i32>} : memref<8x128xbf16, #tpu.memory_space<vmem>>, vector<8x128xbf16>,
    } else {
    }
    return
  }
  func.func @transform_0(%arg0: i32, %arg1: i32) -> (i32, i32) {
    %c0_i32 = arith.constant 0 : i32
    %c0_i32_0 = arith.constant 0 : i32
    return %arg0, %c0_i32 : i32, i32
  }
  func.func @transform_1(%arg0: i32, %arg1: i32) -> (i32, i32, i32) {
    %c0_i32 = arith.constant 0 : i32
    %c0_i32_0 = arith.constant 0 : i32
    %c0_i32_1 = arith.constant 0 : i32
    %c0_i32_2 = arith.constant 0 : i32
    return %c0_i32, %c0_i32_0, %c0_i32_1 : i32, i32, i32
  }
  func.func @transform_2(%arg0: i32, %arg1: i32) -> (i32, i32, i32) {
    %c0_i32 = arith.constant 0 : i32
    %c0_i32_0 = arith.constant 0 : i32
    %c0_i32_1 = arith.constant 0 : i32
    %c0_i32_2 = arith.constant 0 : i32
    return %c0_i32, %c0_i32_0, %c0_i32_1 : i32, i32, i32
  }
  func.func @transform_3(%arg0: i32, %arg1: i32) -> (i32, i32, i32) {
    %c0_i32 = arith.constant 0 : i32
    %c0_i32_0 = arith.constant 0 : i32
    %c0_i32_1 = arith.constant 0 : i32
    %c0_i32_2 = arith.constant 0 : i32
    return %c0_i32, %c0_i32_0, %c0_i32_1 : i32, i32, i32
  }
  func.func @transform_4(%arg0: i32, %arg1: i32) -> (i32, i32) {
    %c0_i32 = arith.constant 0 : i32
    %c0_i32_0 = arith.constant 0 : i32
    %c0_i32_1 = arith.constant 0 : i32
    return %c0_i32, %c0_i32_0 : i32, i32
  }
  func.func @transform_5(%arg0: i32, %arg1: i32) -> (i32, i32) {
    %c0_i32 = arith.constant 0 : i32
    %c0_i32_0 = arith.constant 0 : i32
    return %arg0, %c0_i32 : i32, i32
  }
}

</mosaic_0001>

<llo_original>
// kernel: tpu_custom_call.1
$region0: #{tpu_custom_call.1}
  #allocation0 [shape = 'u32[]', space=smem, size = 0x4, offset = 0x4, fixed_abs, tag = 'smem constant byte address 0x4 - core index']
  #allocation1 [shape = 'u32[144,128]{1,0:T(1,128)}', space=vmem, size = 0x12000, scoped, tag = 'internal scratch']
  #allocation2 [shape = 'f32[8,128]{1,0:T(8,128)}', space=vmem, size = 0x1000, scoped, tag = 'scratch operand']
  %s0 = inlined_call_operand.hbm [shape: bf16[16,128], index: 0, kind: input, shape index: {}]
  %s1 = inlined_call_operand.hbm [shape: bf16[1,128,512], index: 1, kind: input, shape index: {}]
  %s2 = inlined_call_operand.vmem [shape: bf16[1,1,512], index: 2, kind: input, shape index: {}]
  %s3 = inlined_call_operand.hbm [shape: bf16[1,512,128], index: 3, kind: input, shape index: {}]
  %s4 = inlined_call_operand.vmem [shape: bf16[1,128], index: 4, kind: input, shape index: {}]
  %s5 = inlined_call_operand.hbm [shape: bf16[16,128], index: 5, kind: output, shape index: {}]
  %s6 = sld [smem:[#allocation0]]
  $region73: #{tpu_custom_call.1} parent=0
    _
  %s8 = ssub.s32 1, %s6
  %s9 = scalar_select 0, %s8, %s6
  $region1: #{tpu_custom_call.1} parent=0
    #allocation3 [shape = 'u8[4096]{0}', space=vmem, size = 0x1000, scoped, tag = 'input window, operand 0']
    #allocation4 [shape = 's32[2]{0}', space=sflag, size = 0x8, scoped, tag = 'scoped memory for tpu_custom_call.1']
    #allocation5 [shape = 's32[2]{0}', space=sflag, size = 0x8, scoped, tag = 'scoped memory for tpu_custom_call.1']
    #allocation6 [shape = 'u8[131072]{0}', space=vmem, size = 0x20000, scoped, tag = 'input window, operand 1, single buffered']
    #allocation7 [shape = 's32[1]{0}', space=sflag, size = 0x4, scoped, tag = 'scoped memory for tpu_custom_call.1']
    #allocation8 [shape = 'u8[131072]{0}', space=vmem, size = 0x20000, scoped, tag = 'input window, operand 3, single buffered']
    #allocation9 [shape = 'u8[4096]{0}', space=vmem, size = 0x1000, scoped, tag = 'output window, operand 0']
    %10 = vsyncpa [#allocation4], 0
    %s11 = scalar_lea.sflag [#allocation4], 1
    %12 = vsyncpa %s11, 0
    %13 = vsyncpa [#allocation7], 0
    %14 = vsyncpa [#allocation5], 0
    %s15 = scalar_lea.sflag [#allocation5], 1
    %16 = vsyncpa %s15, 0
    loop: start=0, step=1, limit=4
    $region2: #{tpu_custom_call.1} parent=1 // loop_pre_header
      _
    $region3: #{tpu_custom_call.1} parent=1 // loop_header
      %s18 = sphi 0, %s22
      %p19 = scmp.ge.s32.totalorder %s18, 4
      %s25 = sphi 0, %s37
      %s26 = sphi 0, %s33
      %s27 = sphi 0, %s25
      %s28 = sphi 0, %s26
      %s29 = sphi 0, %s27
      %s30 = sphi 0, %s28
      %s40 = sphi 0, %s42
      %s43 = sphi 0, %s40
      %s44 = sphi 0, %s43
      %s60 = sphi 0, %s44
      %s64 = sphi 0, %s64
      %s66 = sphi 0, %s64
      %s67 = sphi 0, %s66
      %s81 = sphi 0, %s67
      %s85 = sphi 0, %s85
      %s87 = sphi 0, %s85
      %s88 = sphi 0, %s87
      %s102 = sphi 0, %s88
      %s106 = sphi 0, %s106
      %s108 = sphi 0, %s106
      %s109 = sphi 0, %s108
      %s123 = sphi 0, %s109
      %s127 = sphi 0, %s127
      %s129 = sphi 0, %s127
      %s130 = sphi 0, %s129
      %s144 = sphi 0, %s130
      %s150 = sphi 0, %s152
      %s153 = sphi 0, %s150
      %s154 = sphi 0, %s153
      %s170 = sphi 0, %s154
    $region4: #{tpu_custom_call.1} parent=1 // loop_header_branch
      %21 = sbr.rel (%p19) target = $region8
    $region5: #{tpu_custom_call.1} parent=1 // loop_body
      %s23 = ssub.s32 %s18, 1
      %s24 = ssub.s32 %s18, 2
      %s31 = sadd.s32 1, %s26
      %p32 = scmp.ge.s32.totalorder %s31, 1
      %s33 = scalar_select %p32, 0, %s31
      %s34 = sadd.s32 1, %s25
      %s35 = scalar_select %p32, %s34, %s25
      %p36 = scmp.ge.s32.totalorder %s35, 2
      %s37 = scalar_select %p36, 0, %s35
      %s38 = ssub.s32 %s25, %s37
      %p39 = scmp.eq.s32.totalorder %s38, 0
      %s41 = sadd.s32 %s40, 1
      %s42 = scalar_select %p39, %s40, %s41
      %p45 = pneg %p39
      %p46 = scmp.eq.s32.totalorder %s18, 1
      %p47 = por %p45, %p46
      %p48 = scmp.ne.s32.totalorder %s40, %s43
      %p49 = scmp.eq.s32.totalorder %s18, 0
      %p50 = por %p48, %p49
      %p51 = scmp.ne.s32.totalorder %s40, %s43
      %p52 = scmp.eq.s32.totalorder %s23, 1
      %p53 = por %p51, %p52
      %p54 = scmp.ne.s32.totalorder %s43, %s44
      %p55 = scmp.eq.s32.totalorder %s23, 0
      %p56 = por %p54, %p55
      %p57 = scmp.ne.s32.totalorder %s43, %s44
      %p58 = scmp.eq.s32.totalorder %s24, 1
      %p59 = por %p57, %p58
      %p61 = scmp.ne.s32.totalorder %s44, %s60
      %p62 = scmp.eq.s32.totalorder %s24, 0
      %p63 = por %p61, %p62
      %s65 = sadd.s32 %s64, 1
      %p68 = scmp.eq.s32.totalorder %s18, 1
      %p69 = scmp.ne.s32.totalorder %s64, %s66
      %p70 = scmp.eq.s32.totalorder %s18, 0
      %p71 = por %p69, %p70
      %p72 = scmp.ne.s32.totalorder %s64, %s66
      %p73 = scmp.eq.s32.totalorder %s23, 1
      %p74 = por %p72, %p73
      %p75 = scmp.ne.s32.totalorder %s66, %s67
      %p76 = scmp.eq.s32.totalorder %s23, 0
      %p77 = por %p75, %p76
      %p78 = scmp.ne.s32.totalorder %s66, %s67
      %p79 = scmp.eq.s32.totalorder %s24, 1
      %p80 = por %p78, %p79
      %p82 = scmp.ne.s32.totalorder %s67, %s81
      %p83 = scmp.eq.s32.totalorder %s24, 0
      %p84 = por %p82, %p83
      %s86 = sadd.s32 %s85, 1
      %p89 = scmp.eq.s32.totalorder %s18, 1
      %p90 = scmp.ne.s32.totalorder %s85, %s87
      %p91 = scmp.eq.s32.totalorder %s18, 0
      %p92 = por %p90, %p91
      %p93 = scmp.ne.s32.totalorder %s85, %s87
      %p94 = scmp.eq.s32.totalorder %s23, 1
      %p95 = por %p93, %p94
      %p96 = scmp.ne.s32.totalorder %s87, %s88
      %p97 = scmp.eq.s32.totalorder %s23, 0
      %p98 = por %p96, %p97
      %p99 = scmp.ne.s32.totalorder %s87, %s88
      %p100 = scmp.eq.s32.totalorder %s24, 1
      %p101 = por %p99, %p100
      %p103 = scmp.ne.s32.totalorder %s88, %s102
      %p104 = scmp.eq.s32.totalorder %s24, 0
      %p105 = por %p103, %p104
      %s107 = sadd.s32 %s106, 1
      %p110 = scmp.eq.s32.totalorder %s18, 1
      %p111 = scmp.ne.s32.totalorder %s106, %s108
      %p112 = scmp.eq.s32.totalorder %s18, 0
      %p113 = por %p111, %p112
      %p114 = scmp.ne.s32.totalorder %s106, %s108
      %p115 = scmp.eq.s32.totalorder %s23, 1
      %p116 = por %p114, %p115
      %p117 = scmp.ne.s32.totalorder %s108, %s109
      %p118 = scmp.eq.s32.totalorder %s23, 0
      %p119 = por %p117, %p118
      %p120 = scmp.ne.s32.totalorder %s108, %s109
      %p121 = scmp.eq.s32.totalorder %s24, 1
      %p122 = por %p120, %p121
      %p124 = scmp.ne.s32.totalorder %s109, %s123
      %p125 = scmp.eq.s32.totalorder %s24, 0
      %p126 = por %p124, %p125
      %s128 = sadd.s32 %s127, 1
      %p131 = scmp.eq.s32.totalorder %s18, 1
      %p132 = scmp.ne.s32.totalorder %s127, %s129
      %p133 = scmp.eq.s32.totalorder %s18, 0
      %p134 = por %p132, %p133
      %p135 = scmp.ne.s32.totalorder %s127, %s129
      %p136 = scmp.eq.s32.totalorder %s23, 1
      %p137 = por %p135, %p136
      %p138 = scmp.ne.s32.totalorder %s129, %s130
      %p139 = scmp.eq.s32.totalorder %s23, 0
      %p140 = por %p138, %p139
      %p141 = scmp.ne.s32.totalorder %s129, %s130
      %p142 = scmp.eq.s32.totalorder %s24, 1
      %p143 = por %p141, %p142
      %p145 = scmp.ne.s32.totalorder %s130, %s144
      %p146 = scmp.eq.s32.totalorder %s24, 0
      %p147 = por %p145, %p146
      %s148 = ssub.s32 %s25, %s37
      %p149 = scmp.eq.s32.totalorder %s148, 0
      %s151 = sadd.s32 %s150, 1
      %s152 = scalar_select %p149, %s150, %s151
      %p155 = pneg %p149
      %p156 = scmp.eq.s32.totalorder %s18, 1
      %p157 = por %p155, %p156
      %p158 = scmp.ne.s32.totalorder %s150, %s153
      %p159 = scmp.eq.s32.totalorder %s18, 0
      %p160 = por %p158, %p159
      %p161 = scmp.ne.s32.totalorder %s150, %s153
      %p162 = scmp.eq.s32.totalorder %s23, 1
      %p163 = por %p161, %p162
      %p164 = scmp.ne.s32.totalorder %s153, %s154
      %p165 = scmp.eq.s32.totalorder %s23, 0
      %p166 = por %p164, %p165
      %p167 = scmp.ne.s32.totalorder %s153, %s154
      %p168 = scmp.eq.s32.totalorder %s24, 1
      %p169 = por %p167, %p168
      %p171 = scmp.ne.s32.totalorder %s154, %s170
      %p172 = scmp.eq.s32.totalorder %s24, 0
      %p173 = por %p171, %p172
      %p174 = scmp.le.s32.totalorder 1, %s18
      %p175 = scmp.lt.s32.totalorder %s18, 3
      %p176 = pnand %p174, %p175
      %p177 = pneg %p176
      // Predicated region
      $region9: #{tpu_custom_call.1} parent=5 // pred_check
        _
      $region10: #{tpu_custom_call.1} parent=5 // pred_check_branch
        %179 = sbr.rel (%p176) target = $region12
      $region11: #{tpu_custom_call.1} parent=5 // pred_region
        %s180 = ssub.s32 %s18, 1
        // Predicated region
        $region13: #{tpu_custom_call.1} parent=11 // pred_check
          %p181 = pneg %p77
        $region14: #{tpu_custom_call.1} parent=11 // pred_check_branch
          %183 = sbr.rel (%p181) target = $region16
        $region15: #{tpu_custom_call.1} parent=11 // pred_region
          %s185 = ssub.s32 4096, 4096
          %186 = vsyncadd [#allocation7], %s185
          %s187 = sshll.u32 [#allocation6], 4
          %s188 = int_to_ptr.vmem [resolvable:$true] %s187
          %193 = dma.hbm_to_vmem [thread:$0]  %s1, 4096, %s188, [#allocation7], 256, 256, 16
        $region16: #{tpu_custom_call.1} parent=11 // pred_fallthru
          _
        // Predicated region
        $region17: #{tpu_custom_call.1} parent=11 // pred_check
          %p194 = pneg %p98
        $region18: #{tpu_custom_call.1} parent=11 // pred_check_branch
          %196 = sbr.rel (%p194) target = $region20
        $region19: #{tpu_custom_call.1} parent=11 // pred_region
          _
        $region20: #{tpu_custom_call.1} parent=11 // pred_fallthru
          _
        // Predicated region
        $region21: #{tpu_custom_call.1} parent=11 // pred_check
          %p197 = pneg %p119
        $region22: #{tpu_custom_call.1} parent=11 // pred_check_branch
          %199 = sbr.rel (%p197) target = $region24
        $region23: #{tpu_custom_call.1} parent=11 // pred_region
          %s201 = ssub.s32 4096, 4096
          %202 = vsyncadd [#allocation7], %s201
          %s203 = sshll.u32 [#allocation8], 4
          %s204 = int_to_ptr.vmem [resolvable:$true] %s203
          %209 = dma.hbm_to_vmem [thread:$0]  %s3, 4096, %s204, [#allocation7], 64, 64, 4
        $region24: #{tpu_custom_call.1} parent=11 // pred_fallthru
          _
        // Predicated region
        $region25: #{tpu_custom_call.1} parent=11 // pred_check
          %p210 = pneg %p140
        $region26: #{tpu_custom_call.1} parent=11 // pred_check_branch
          %212 = sbr.rel (%p210) target = $region28
        $region27: #{tpu_custom_call.1} parent=11 // pred_region
          _
        $region28: #{tpu_custom_call.1} parent=11 // pred_fallthru
          _
      $region12: #{tpu_custom_call.1} parent=5 // pred_fallthru
        _
      %p213 = scmp.lt.s32.totalorder %s18, 2
      // Predicated region
      $region29: #{tpu_custom_call.1} parent=5 // pred_check
        %p214 = pneg %p213
      $region30: #{tpu_custom_call.1} parent=5 // pred_check_branch
        %216 = sbr.rel (%p214) target = $region32
      $region31: #{tpu_custom_call.1} parent=5 // pred_region
        // Predicated region
        $region33: #{tpu_custom_call.1} parent=31 // pred_check
          %p217 = pneg %p50
        $region34: #{tpu_custom_call.1} parent=31 // pred_check_branch
          %219 = sbr.rel (%p217) target = $region36
        $region35: #{tpu_custom_call.1} parent=31 // pred_region
          %s220 = sand.u32 %s40, 1
          %s221 = scalar_lea.sflag [#allocation4], %s220
          %s222 = sand.u32 %s40, 1
          %s223 = smul.addr %s222, 4
          %s224 = scalar_lea.vmem [#allocation3], %s223
          %s226 = ssub.s32 64, 64
          %227 = vsyncadd %s221, %s226
          %s228 = smul.addr %s25, 64
          %s229 = scalar_lea.hbm %s0, %s228
          %s231 = sshll.u32 %s224, 4
          %s232 = int_to_ptr.vmem [resolvable:$true] %s231
          %234 = dma.hbm_to_vmem [thread:$0]  %s229, 64, %s232, %s221
        $region36: #{tpu_custom_call.1} parent=31 // pred_fallthru
          _
      $region32: #{tpu_custom_call.1} parent=5 // pred_fallthru
        _
      %p235 = scmp.le.s32.totalorder 1, %s18
      %p236 = scmp.lt.s32.totalorder %s18, 3
      %p237 = pnand %p235, %p236
      %p238 = pneg %p237
      // Predicated region
      $region37: #{tpu_custom_call.1} parent=5 // pred_check
        _
      $region38: #{tpu_custom_call.1} parent=5 // pred_check_branch
        %240 = sbr.rel (%p237) target = $region40
      $region39: #{tpu_custom_call.1} parent=5 // pred_region
        %s241 = ssub.s32 %s18, 1
        %s242 = sand.u32 %s43, 1
        %s243 = scalar_lea.sflag [#allocation4], %s242
        %s244 = sand.u32 %s43, 1
        %s245 = smul.addr %s244, 4
        %s246 = scalar_lea.vmem [#allocation3], %s245
        // Predicated region
        $region41: #{tpu_custom_call.1} parent=39 // pred_check
          %p247 = pneg %p56
        $region42: #{tpu_custom_call.1} parent=39 // pred_check_branch
          %249 = sbr.rel (%p247) target = $region44
        $region43: #{tpu_custom_call.1} parent=39 // pred_region
          %250 = dma.done %s243, 64
        $region44: #{tpu_custom_call.1} parent=39 // pred_fallthru
          _
        // Predicated region
        $region45: #{tpu_custom_call.1} parent=39 // pred_check
          %p251 = pneg %p77
        $region46: #{tpu_custom_call.1} parent=39 // pred_check_branch
          %253 = sbr.rel (%p251) target = $region48
        $region47: #{tpu_custom_call.1} parent=39 // pred_region
          %254 = dma.done [#allocation7], 4096
        $region48: #{tpu_custom_call.1} parent=39 // pred_fallthru
          _
        // Predicated region
        $region49: #{tpu_custom_call.1} parent=39 // pred_check
          %p255 = pneg %p119
        $region50: #{tpu_custom_call.1} parent=39 // pred_check_branch
          %257 = sbr.rel (%p255) target = $region52
        $region51: #{tpu_custom_call.1} parent=39 // pred_region
          %258 = dma.done [#allocation7], 4096
        $region52: #{tpu_custom_call.1} parent=39 // pred_fallthru
          _
        %s259 = sand.u32 %s43, 1
        %s260 = scalar_lea.sflag [#allocation4], %s259
        %s261 = sand.u32 %s43, 1
        %s262 = smul.addr %s261, 4
        %s263 = scalar_lea.vmem [#allocation3], %s262
        %p264 = pneg %p56
        %p265 = pneg %p53
        %p266 = pneg %p77
        %p267 = pneg %p74
        %p268 = pneg %p98
        %p269 = pneg %p95
        %p270 = pneg %p119
        %p271 = pneg %p116
        %p272 = pneg %p140
        %p273 = pneg %p137
        %p274 = pneg %p166
        %p275 = pneg %p163
        %s276 = sand.u32 %s153, 1
        %s277 = scalar_lea.sflag [#allocation5], %s276
        %s278 = sand.u32 %s153, 1
        %s279 = smul.addr %s278, 4
        %s280 = scalar_lea.vmem [#allocation9], %s279
        %p282 = scmp.eq.s32.totalorder %s28, 0
        // Predicated region
        $region53: #{tpu_custom_call.1} parent=39 // pred_check
          %p283 = pneg %p282
        $region54: #{tpu_custom_call.1} parent=39 // pred_check_branch
          %285 = sbr.rel (%p283) target = $region56
        $region55: #{tpu_custom_call.1} parent=39 // pred_region
          %286 = vst [vmem:[#allocation2] sm:$0xff] 0.0
        $region56: #{tpu_custom_call.1} parent=39 // pred_fallthru
          _
        %s287 = smul.u32 %s28, 64
        %s288 = smul.addr %s287, 4
        %s289 = scalar_lea.vmem [#allocation6], %s288
        %v290 = vld [vmem:[%s289] sm:$0xff]
        %v291 = vld [vmem:[%s289 + $0x8] sm:$0xff]
        %v292 = vld [vmem:[%s289 + $0x10] sm:$0xff]
        %v293 = vld [vmem:[%s289 + $0x18] sm:$0xff]
        %v294 = vld [vmem:[%s289 + $0x20] sm:$0xff]
        %v295 = vld [vmem:[%s289 + $0x28] sm:$0xff]
        %v296 = vld [vmem:[%s289 + $0x30] sm:$0xff]
        %v297 = vld [vmem:[%s289 + $0x38] sm:$0xff]
        %v298 = vld [vmem:[%s289 + $0x40] sm:$0xff]
        %v299 = vld [vmem:[%s289 + $0x48] sm:$0xff]
        %v300 = vld [vmem:[%s289 + $0x50] sm:$0xff]
        %v301 = vld [vmem:[%s289 + $0x58] sm:$0xff]
        %v302 = vld [vmem:[%s289 + $0x60] sm:$0xff]
        %v303 = vld [vmem:[%s289 + $0x68] sm:$0xff]
        %v304 = vld [vmem:[%s289 + $0x70] sm:$0xff]
        %v305 = vld [vmem:[%s289 + $0x78] sm:$0xff]
        %v306 = vld [vmem:[%s289 + $0x80] sm:$0xff]
        %v307 = vld [vmem:[%s289 + $0x88] sm:$0xff]
        %v308 = vld [vmem:[%s289 + $0x90] sm:$0xff]
        %v309 = vld [vmem:[%s289 + $0x98] sm:$0xff]
        %v310 = vld [vmem:[%s289 + $0xa0] sm:$0xff]
        %v311 = vld [vmem:[%s289 + $0xa8] sm:$0xff]
        %v312 = vld [vmem:[%s289 + $0xb0] sm:$0xff]
        %v313 = vld [vmem:[%s289 + $0xb8] sm:$0xff]
        %v314 = vld [vmem:[%s289 + $0xc0] sm:$0xff]
        %v315 = vld [vmem:[%s289 + $0xc8] sm:$0xff]
        %v316 = vld [vmem:[%s289 + $0xd0] sm:$0xff]
        %v317 = vld [vmem:[%s289 + $0xd8] sm:$0xff]
        %v318 = vld [vmem:[%s289 + $0xe0] sm:$0xff]
        %v319 = vld [vmem:[%s289 + $0xe8] sm:$0xff]
        %v320 = vld [vmem:[%s289 + $0xf0] sm:$0xff]
        %v321 = vld [vmem:[%s289 + $0xf8] sm:$0xff]
        %s322 = smul.u32 %s28, 4
        %s323 = scalar_lea.vmem %s2, %s322
        %v324 = vld [vmem:[%s323] sm:$0xf]
        %s325 = smul.addr %s287, 4
        %s326 = scalar_lea.vmem [#allocation8], %s325
        %v327 = vld [vmem:[%s326] sm:$0xf]
        %v328 = vld [vmem:[%s326 + $0x4] sm:$0xf]
        %v329 = vld [vmem:[%s326 + $0x8] sm:$0xf]
        %v330 = vld [vmem:[%s326 + $0xc] sm:$0xf]
        %v331 = vld [vmem:[%s326 + $0x10] sm:$0xf]
        %v332 = vld [vmem:[%s326 + $0x14] sm:$0xf]
        %v333 = vld [vmem:[%s326 + $0x18] sm:$0xf]
        %v334 = vld [vmem:[%s326 + $0x1c] sm:$0xf]
        %v335 = vld [vmem:[%s326 + $0x20] sm:$0xf]
        %v336 = vld [vmem:[%s326 + $0x24] sm:$0xf]
        %v337 = vld [vmem:[%s326 + $0x28] sm:$0xf]
        %v338 = vld [vmem:[%s326 + $0x2c] sm:$0xf]
        %v339 = vld [vmem:[%s326 + $0x30] sm:$0xf]
        %v340 = vld [vmem:[%s326 + $0x34] sm:$0xf]
        %v341 = vld [vmem:[%s326 + $0x38] sm:$0xf]
        %v342 = vld [vmem:[%s326 + $0x3c] sm:$0xf]
        %v343 = vld [vmem:[%s326 + $0x40] sm:$0xf]
        %v344 = vld [vmem:[%s326 + $0x44] sm:$0xf]
        %v345 = vld [vmem:[%s326 + $0x48] sm:$0xf]
        %v346 = vld [vmem:[%s326 + $0x4c] sm:$0xf]
        %v347 = vld [vmem:[%s326 + $0x50] sm:$0xf]
        %v348 = vld [vmem:[%s326 + $0x54] sm:$0xf]
        %v349 = vld [vmem:[%s326 + $0x58] sm:$0xf]
        %v350 = vld [vmem:[%s326 + $0x5c] sm:$0xf]
        %v351 = vld [vmem:[%s326 + $0x60] sm:$0xf]
        %v352 = vld [vmem:[%s326 + $0x64] sm:$0xf]
        %v353 = vld [vmem:[%s326 + $0x68] sm:$0xf]
        %v354 = vld [vmem:[%s326 + $0x6c] sm:$0xf]
        %v355 = vld [vmem:[%s326 + $0x70] sm:$0xf]
        %v356 = vld [vmem:[%s326 + $0x74] sm:$0xf]
        %v357 = vld [vmem:[%s326 + $0x78] sm:$0xf]
        %v358 = vld [vmem:[%s326 + $0x7c] sm:$0xf]
        %v359 = vld [vmem:[%s326 + $0x80] sm:$0xf]
        %v360 = vld [vmem:[%s326 + $0x84] sm:$0xf]
        %v361 = vld [vmem:[%s326 + $0x88] sm:$0xf]
        %v362 = vld [vmem:[%s326 + $0x8c] sm:$0xf]
        %v363 = vld [vmem:[%s326 + $0x90] sm:$0xf]
        %v364 = vld [vmem:[%s326 + $0x94] sm:$0xf]
        %v365 = vld [vmem:[%s326 + $0x98] sm:$0xf]
        %v366 = vld [vmem:[%s326 + $0x9c] sm:$0xf]
        %v367 = vld [vmem:[%s326 + $0xa0] sm:$0xf]
        %v368 = vld [vmem:[%s326 + $0xa4] sm:$0xf]
        %v369 = vld [vmem:[%s326 + $0xa8] sm:$0xf]
        %v370 = vld [vmem:[%s326 + $0xac] sm:$0xf]
        %v371 = vld [vmem:[%s326 + $0xb0] sm:$0xf]
        %v372 = vld [vmem:[%s326 + $0xb4] sm:$0xf]
        %v373 = vld [vmem:[%s326 + $0xb8] sm:$0xf]
        %v374 = vld [vmem:[%s326 + $0xbc] sm:$0xf]
        %v375 = vld [vmem:[%s326 + $0xc0] sm:$0xf]
        %v376 = vld [vmem:[%s326 + $0xc4] sm:$0xf]
        %v377 = vld [vmem:[%s326 + $0xc8] sm:$0xf]
        %v378 = vld [vmem:[%s326 + $0xcc] sm:$0xf]
        %v379 = vld [vmem:[%s326 + $0xd0] sm:$0xf]
        %v380 = vld [vmem:[%s326 + $0xd4] sm:$0xf]
        %v381 = vld [vmem:[%s326 + $0xd8] sm:$0xf]
        %v382 = vld [vmem:[%s326 + $0xdc] sm:$0xf]
        %v383 = vld [vmem:[%s326 + $0xe0] sm:$0xf]
        %v384 = vld [vmem:[%s326 + $0xe4] sm:$0xf]
        %v385 = vld [vmem:[%s326 + $0xe8] sm:$0xf]
        %v386 = vld [vmem:[%s326 + $0xec] sm:$0xf]
        %v387 = vld [vmem:[%s326 + $0xf0] sm:$0xf]
        %v388 = vld [vmem:[%s326 + $0xf4] sm:$0xf]
        %v389 = vld [vmem:[%s326 + $0xf8] sm:$0xf]
        %v390 = vld [vmem:[%s326 + $0xfc] sm:$0xf]
        %v391 = vld [vmem:[%s246] sm:$0xf]
        %v392 = vunpack.c.l.bf16 %v324
        %v394 = vlaneseq
        %v395 = vshrl.u32 %v394, 7
        %v396 = vsub.s32 0, %v395
        %v397 = vrot.slane %v392, %v396
        %v398 = vlaneseq
        %v399 = vshrl.u32 %v398, 7
        %v400 = vsub.s32 2, %v399
        %v401 = vrot.slane %v392, %v400
        %v402 = vlaneseq
        %v403 = vshrl.u32 %v402, 7
        %v404 = vsub.s32 4, %v403
        %v405 = vrot.slane %v392, %v404
        %v406 = vlaneseq
        %v407 = vshrl.u32 %v406, 7
        %v408 = vsub.s32 6, %v407
        %v409 = vrot.slane %v392, %v408
        %v414 = vlaneseq
        %v415 = vshrl.u32 %v414, 7
        %v416 = vsub.s32 0, %v415
        %v417 = vrot.slane %v397, %v416
        %v418 = vlaneseq
        %v419 = vshrl.u32 %v418, 7
        %v420 = vsub.s32 0, %v419
        %v421 = vrot.slane %v401, %v420
        %v422 = vlaneseq
        %v423 = vshrl.u32 %v422, 7
        %v424 = vsub.s32 0, %v423
        %v425 = vrot.slane %v405, %v424
        %v426 = vlaneseq
        %v427 = vshrl.u32 %v426, 7
        %v428 = vsub.s32 0, %v427
        %v429 = vrot.slane %v409, %v428
        %v462 = vunpack.c.l.b16 %v290
        %v463 = vunpack.c.h.b16 %v290
        %v464 = vunpack.c.l.b16 %v291
        %v465 = vunpack.c.h.b16 %v291
        %v466 = vunpack.c.l.b16 %v292
        %v467 = vunpack.c.h.b16 %v292
        %v468 = vunpack.c.l.b16 %v293
        %v469 = vunpack.c.h.b16 %v293
        %v470 = vunpack.c.l.b16 %v294
        %v471 = vunpack.c.h.b16 %v294
        %v472 = vunpack.c.l.b16 %v295
        %v473 = vunpack.c.h.b16 %v295
        %v474 = vunpack.c.l.b16 %v296
        %v475 = vunpack.c.h.b16 %v296
        %v476 = vunpack.c.l.b16 %v297
        %v477 = vunpack.c.h.b16 %v297
        %v478 = vunpack.c.l.b16 %v298
        %v479 = vunpack.c.h.b16 %v298
        %v480 = vunpack.c.l.b16 %v299
        %v481 = vunpack.c.h.b16 %v299
        %v482 = vunpack.c.l.b16 %v300
        %v483 = vunpack.c.h.b16 %v300
        %v484 = vunpack.c.l.b16 %v301
        %v485 = vunpack.c.h.b16 %v301
        %v486 = vunpack.c.l.b16 %v302
        %v487 = vunpack.c.h.b16 %v302
        %v488 = vunpack.c.l.b16 %v303
        %v489 = vunpack.c.h.b16 %v303
        %v490 = vunpack.c.l.b16 %v304
        %v491 = vunpack.c.h.b16 %v304
        %v492 = vunpack.c.l.b16 %v305
        %v493 = vunpack.c.h.b16 %v305
        %v494 = vunpack.c.l.b16 %v306
        %v495 = vunpack.c.h.b16 %v306
        %v496 = vunpack.c.l.b16 %v307
        %v497 = vunpack.c.h.b16 %v307
        %v498 = vunpack.c.l.b16 %v308
        %v499 = vunpack.c.h.b16 %v308
        %v500 = vunpack.c.l.b16 %v309
        %v501 = vunpack.c.h.b16 %v309
        %v502 = vunpack.c.l.b16 %v310
        %v503 = vunpack.c.h.b16 %v310
        %v504 = vunpack.c.l.b16 %v311
        %v505 = vunpack.c.h.b16 %v311
        %v506 = vunpack.c.l.b16 %v312
        %v507 = vunpack.c.h.b16 %v312
        %v508 = vunpack.c.l.b16 %v313
        %v509 = vunpack.c.h.b16 %v313
        %v510 = vunpack.c.l.b16 %v314
        %v511 = vunpack.c.h.b16 %v314
        %v512 = vunpack.c.l.b16 %v315
        %v513 = vunpack.c.h.b16 %v315
        %v514 = vunpack.c.l.b16 %v316
        %v515 = vunpack.c.h.b16 %v316
        %v516 = vunpack.c.l.b16 %v317
        %v517 = vunpack.c.h.b16 %v317
        %v518 = vunpack.c.l.b16 %v318
        %v519 = vunpack.c.h.b16 %v318
        %v520 = vunpack.c.l.b16 %v319
        %v521 = vunpack.c.h.b16 %v319
        %v522 = vunpack.c.l.b16 %v320
        %v523 = vunpack.c.h.b16 %v320
        %v524 = vunpack.c.l.b16 %v321
        %v525 = vunpack.c.h.b16 %v321
        %v526 = vpack.c.b16 %v466, %v462
        %v527 = vpack.c.b16 %v467, %v463
        %v528 = vpack.c.b16 %v468, %v464
        %v529 = vpack.c.b16 %v469, %v465
        %v530 = vpack.c.b16 %v474, %v470
        %v531 = vpack.c.b16 %v475, %v471
        %v532 = vpack.c.b16 %v476, %v472
        %v533 = vpack.c.b16 %v477, %v473
        %v534 = vpack.c.b16 %v482, %v478
        %v535 = vpack.c.b16 %v483, %v479
        %v536 = vpack.c.b16 %v484, %v480
        %v537 = vpack.c.b16 %v485, %v481
        %v538 = vpack.c.b16 %v490, %v486
        %v539 = vpack.c.b16 %v491, %v487
        %v540 = vpack.c.b16 %v492, %v488
        %v541 = vpack.c.b16 %v493, %v489
        %v542 = vpack.c.b16 %v498, %v494
        %v543 = vpack.c.b16 %v499, %v495
        %v544 = vpack.c.b16 %v500, %v496
        %v545 = vpack.c.b16 %v501, %v497
        %v546 = vpack.c.b16 %v506, %v502
        %v547 = vpack.c.b16 %v507, %v503
        %v548 = vpack.c.b16 %v508, %v504
        %v549 = vpack.c.b16 %v509, %v505
        %v550 = vpack.c.b16 %v514, %v510
        %v551 = vpack.c.b16 %v515, %v511
        %v552 = vpack.c.b16 %v516, %v512
        %v553 = vpack.c.b16 %v517, %v513
        %v554 = vpack.c.b16 %v522, %v518
        %v555 = vpack.c.b16 %v523, %v519
        %v556 = vpack.c.b16 %v524, %v520
        %v557 = vpack.c.b16 %v525, %v521
        %590 = vmatprep.subr.bf16.mxu0 %v527
        %591 = vmatpush1.bf16.msra.mxu0 %v526
        %592 = vmatprep.subr.bf16.mxu0 %v531
        %593 = vmatpush1.bf16.msra.mxu0 %v530
        %594 = vmatprep.subr.bf16.mxu0 %v535
        %595 = vmatpush1.bf16.msra.mxu0 %v534
        %596 = vmatprep.subr.bf16.mxu0 %v539
        %597 = vmatpush1.bf16.msra.mxu0 %v538
        %598 = vmatprep.subr.bf16.mxu0 %v543
        %599 = vmatpush1.bf16.msra.mxu0 %v542
        %600 = vmatprep.subr.bf16.mxu0 %v547
        %601 = vmatpush1.bf16.msra.mxu0 %v546
        %602 = vmatprep.subr.bf16.mxu0 %v551
        %603 = vmatpush1.bf16.msra.mxu0 %v550
        %604 = vmatprep.subr.bf16.mxu0 %v555
        %605 = vmatpush1.bf16.msra.mxu0 %v554
        %606 = vmatprep.subr.bf16.mxu0 0
        %607 = vmatpush1.bf16.msra.mxu0 0
        %608 = vmatprep.subr.bf16.mxu0 0
        %609 = vmatpush1.bf16.msra.mxu0 0
        %610 = vmatprep.subr.bf16.mxu0 0
        %611 = vmatpush1.bf16.msra.mxu0 0
        %612 = vmatprep.subr.bf16.mxu0 0
        %613 = vmatpush1.bf16.msra.mxu0 0
        %614 = vmatprep.subr.bf16.mxu0 0
        %615 = vmatpush1.bf16.msra.mxu0 0
        %616 = vmatprep.subr.bf16.mxu0 0
        %617 = vmatpush1.bf16.msra.mxu0 0
        %618 = vmatprep.subr.bf16.mxu0 0
        %619 = vmatpush1.bf16.msra.mxu0 0
        %620 = vmatprep.subr.bf16.mxu0 0
        %621 = vmatpush1.bf16.msra.mxu0 0
        %622 = vmatprep.mubr.bf16.mxu0 0
        %623 = vmatmul.mubr.bf16.gmra.mrb[0].mxu0 %v391
        %v624 = vpop.f32.mrb[0].mxu0
        %v625 = vadd.f32 %v417, %v624
        %v626 = vpop.f32.mrb[0].mxu0
        %v627 = vadd.f32 %v421, %v626
        %v628 = vpop.f32.mrb[0].mxu0
        %v629 = vpop.f32.mrb[0].mxu0
        %630 = vdwg.mxu0
        %631 = vmatprep.subr.bf16.mxu0 %v529
        %632 = vmatpush1.bf16.msra.mxu0 %v528
        %633 = vmatprep.subr.bf16.mxu0 %v533
        %634 = vmatpush1.bf16.msra.mxu0 %v532
        %635 = vmatprep.subr.bf16.mxu0 %v537
        %636 = vmatpush1.bf16.msra.mxu0 %v536
        %637 = vmatprep.subr.bf16.mxu0 %v541
        %638 = vmatpush1.bf16.msra.mxu0 %v540
        %639 = vmatprep.subr.bf16.mxu0 %v545
        %640 = vmatpush1.bf16.msra.mxu0 %v544
        %641 = vmatprep.subr.bf16.mxu0 %v549
        %642 = vmatpush1.bf16.msra.mxu0 %v548
        %643 = vmatprep.subr.bf16.mxu0 %v553
        %644 = vmatpush1.bf16.msra.mxu0 %v552
        %645 = vmatprep.subr.bf16.mxu0 %v557
        %646 = vmatpush1.bf16.msra.mxu0 %v556
        %647 = vmatprep.subr.bf16.mxu0 0
        %648 = vmatpush1.bf16.msra.mxu0 0
        %649 = vmatprep.subr.bf16.mxu0 0
        %650 = vmatpush1.bf16.msra.mxu0 0
        %651 = vmatprep.subr.bf16.mxu0 0
        %652 = vmatpush1.bf16.msra.mxu0 0
        %653 = vmatprep.subr.bf16.mxu0 0
        %654 = vmatpush1.bf16.msra.mxu0 0
        %655 = vmatprep.subr.bf16.mxu0 0
        %656 = vmatpush1.bf16.msra.mxu0 0
        %657 = vmatprep.subr.bf16.mxu0 0
        %658 = vmatpush1.bf16.msra.mxu0 0
        %659 = vmatprep.subr.bf16.mxu0 0
        %660 = vmatpush1.bf16.msra.mxu0 0
        %661 = vmatprep.subr.bf16.mxu0 0
        %662 = vmatpush1.bf16.msra.mxu0 0
        %663 = vmatprep.mubr.bf16.mxu0 0
        %664 = vmatmul.mubr.bf16.gmra.mrb[0].mxu0 %v391
        %v665 = vpop.f32.mrb[0].mxu0
        %v666 = vadd.f32 %v425, %v665
        %v667 = vpop.f32.mrb[0].mxu0
        %v668 = vadd.f32 %v429, %v667
        %v669 = vpop.f32.mrb[0].mxu0
        %v670 = vpop.f32.mrb[0].mxu0
        %671 = vdwg.mxu0
        %v672 = vmul.f32 %v625, 0.5
        %v673 = vmul.f32 %v627, 0.5
        %v674 = vmul.f32 %v666, 0.5
        %v675 = vmul.f32 %v668, 0.5
        %v676 = vmul.f32 %v625, %v625
        %v677 = vmul.f32 %v627, %v627
        %v678 = vmul.f32 %v666, %v666
        %v679 = vmul.f32 %v668, %v668
        %v680 = vmul.f32 %v676, %v625
        %v681 = vmul.f32 %v677, %v627
        %v682 = vmul.f32 %v678, %v666
        %v683 = vmul.f32 %v679, %v668
        %v684 = vmul.f32 %v680, 0.044715
        %v685 = vmul.f32 %v681, 0.044715
        %v686 = vmul.f32 %v682, 0.044715
        %v687 = vmul.f32 %v683, 0.044715
        %v688 = vadd.f32 %v625, %v684
        %v689 = vadd.f32 %v627, %v685
        %v690 = vadd.f32 %v666, %v686
        %v691 = vadd.f32 %v668, %v687
        %v692 = vmul.f32 %v688, 0.7978846
        %v693 = vmul.f32 %v689, 0.7978846
        %v694 = vmul.f32 %v690, 0.7978846
        %v695 = vmul.f32 %v691, 0.7978846
        %v696 = vtanh.pop %v692
        %v697 = vtanh.pop %v693
        %v698 = vtanh.pop %v694
        %v699 = vtanh.pop %v695
        %v700 = vmul.f32 %v672, %v696
        %v701 = vmul.f32 %v673, %v697
        %v702 = vmul.f32 %v674, %v698
        %v703 = vmul.f32 %v675, %v699
        %v704 = vadd.f32 %v672, %v700
        %v705 = vadd.f32 %v673, %v701
        %v706 = vadd.f32 %v674, %v702
        %v707 = vadd.f32 %v675, %v703
        %v708 = vld [vmem:[#allocation2] sm:$0xff]
        %v709 = vpack.c.bf16 %v704, %v704
        %v710 = vpack.c.bf16 %v705, %v705
        %v711 = vpack.c.bf16 %v706, %v706
        %v712 = vpack.c.bf16 %v707, %v707
        %v777 = vunpack.c.l.b16 %v327
        %v778 = vunpack.c.l.b16 %v328
        %v779 = vunpack.c.l.b16 %v329
        %v780 = vunpack.c.l.b16 %v330
        %v781 = vunpack.c.l.b16 %v331
        %v782 = vunpack.c.l.b16 %v332
        %v783 = vunpack.c.l.b16 %v333
        %v784 = vunpack.c.l.b16 %v334
        %v785 = vunpack.c.l.b16 %v335
        %v786 = vunpack.c.l.b16 %v336
        %v787 = vunpack.c.l.b16 %v337
        %v788 = vunpack.c.l.b16 %v338
        %v789 = vunpack.c.l.b16 %v339
        %v790 = vunpack.c.l.b16 %v340
        %v791 = vunpack.c.l.b16 %v341
        %v792 = vunpack.c.l.b16 %v342
        %v793 = vunpack.c.l.b16 %v343
        %v794 = vunpack.c.l.b16 %v344
        %v795 = vunpack.c.l.b16 %v345
        %v796 = vunpack.c.l.b16 %v346
        %v797 = vunpack.c.l.b16 %v347
        %v798 = vunpack.c.l.b16 %v348
        %v799 = vunpack.c.l.b16 %v349
        %v800 = vunpack.c.l.b16 %v350
        %v801 = vunpack.c.l.b16 %v351
        %v802 = vunpack.c.l.b16 %v352
        %v803 = vunpack.c.l.b16 %v353
        %v804 = vunpack.c.l.b16 %v354
        %v805 = vunpack.c.l.b16 %v355
        %v806 = vunpack.c.l.b16 %v356
        %v807 = vunpack.c.l.b16 %v357
        %v808 = vunpack.c.l.b16 %v358
        %v809 = vunpack.c.l.b16 %v359
        %v810 = vunpack.c.l.b16 %v360
        %v811 = vunpack.c.l.b16 %v361
        %v812 = vunpack.c.l.b16 %v362
        %v813 = vunpack.c.l.b16 %v363
        %v814 = vunpack.c.l.b16 %v364
        %v815 = vunpack.c.l.b16 %v365
        %v816 = vunpack.c.l.b16 %v366
        %v817 = vunpack.c.l.b16 %v367
        %v818 = vunpack.c.l.b16 %v368
        %v819 = vunpack.c.l.b16 %v369
        %v820 = vunpack.c.l.b16 %v370
        %v821 = vunpack.c.l.b16 %v371
        %v822 = vunpack.c.l.b16 %v372
        %v823 = vunpack.c.l.b16 %v373
        %v824 = vunpack.c.l.b16 %v374
        %v825 = vunpack.c.l.b16 %v375
        %v826 = vunpack.c.l.b16 %v376
        %v827 = vunpack.c.l.b16 %v377
        %v828 = vunpack.c.l.b16 %v378
        %v829 = vunpack.c.l.b16 %v379
        %v830 = vunpack.c.l.b16 %v380
        %v831 = vunpack.c.l.b16 %v381
        %v832 = vunpack.c.l.b16 %v382
        %v833 = vunpack.c.l.b16 %v383
        %v834 = vunpack.c.l.b16 %v384
        %v835 = vunpack.c.l.b16 %v385
        %v836 = vunpack.c.l.b16 %v386
        %v837 = vunpack.c.l.b16 %v387
        %v838 = vunpack.c.l.b16 %v388
        %v839 = vunpack.c.l.b16 %v389
        %v840 = vunpack.c.l.b16 %v390
        %v841 = vpack.c.b16 %v778, %v777
        %v842 = vpack.c.b16 %v780, %v779
        %v843 = vpack.c.b16 %v782, %v781
        %v844 = vpack.c.b16 %v784, %v783
        %v845 = vpack.c.b16 %v786, %v785
        %v846 = vpack.c.b16 %v788, %v787
        %v847 = vpack.c.b16 %v790, %v789
        %v848 = vpack.c.b16 %v792, %v791
        %v849 = vpack.c.b16 %v794, %v793
        %v850 = vpack.c.b16 %v796, %v795
        %v851 = vpack.c.b16 %v798, %v797
        %v852 = vpack.c.b16 %v800, %v799
        %v853 = vpack.c.b16 %v802, %v801
        %v854 = vpack.c.b16 %v804, %v803
        %v855 = vpack.c.b16 %v806, %v805
        %v856 = vpack.c.b16 %v808, %v807
        %v857 = vpack.c.b16 %v810, %v809
        %v858 = vpack.c.b16 %v812, %v811
        %v859 = vpack.c.b16 %v814, %v813
        %v860 = vpack.c.b16 %v816, %v815
        %v861 = vpack.c.b16 %v818, %v817
        %v862 = vpack.c.b16 %v820, %v819
        %v863 = vpack.c.b16 %v822, %v821
        %v864 = vpack.c.b16 %v824, %v823
        %v865 = vpack.c.b16 %v826, %v825
        %v866 = vpack.c.b16 %v828, %v827
        %v867 = vpack.c.b16 %v830, %v829
        %v868 = vpack.c.b16 %v832, %v831
        %v869 = vpack.c.b16 %v834, %v833
        %v870 = vpack.c.b16 %v836, %v835
        %v871 = vpack.c.b16 %v838, %v837
        %v872 = vpack.c.b16 %v840, %v839
        %905 = vmatprep.subr.bf16.mxu0 0
        %906 = vmatpush1.bf16.msra.mxu0 %v841
        %907 = vmatprep.subr.bf16.mxu0 0
        %908 = vmatpush1.bf16.msra.mxu0 %v842
        %909 = vmatprep.subr.bf16.mxu0 0
        %910 = vmatpush1.bf16.msra.mxu0 %v843
        %911 = vmatprep.subr.bf16.mxu0 0
        %912 = vmatpush1.bf16.msra.mxu0 %v844
        %913 = vmatprep.subr.bf16.mxu0 0
        %914 = vmatpush1.bf16.msra.mxu0 %v845
        %915 = vmatprep.subr.bf16.mxu0 0
        %916 = vmatpush1.bf16.msra.mxu0 %v846
        %917 = vmatprep.subr.bf16.mxu0 0
        %918 = vmatpush1.bf16.msra.mxu0 %v847
        %919 = vmatprep.subr.bf16.mxu0 0
        %920 = vmatpush1.bf16.msra.mxu0 %v848
        %921 = vmatprep.subr.bf16.mxu0 0
        %922 = vmatpush1.bf16.msra.mxu0 %v849
        %923 = vmatprep.subr.bf16.mxu0 0
        %924 = vmatpush1.bf16.msra.mxu0 %v850
        %925 = vmatprep.subr.bf16.mxu0 0
        %926 = vmatpush1.bf16.msra.mxu0 %v851
        %927 = vmatprep.subr.bf16.mxu0 0
        %928 = vmatpush1.bf16.msra.mxu0 %v852
        %929 = vmatprep.subr.bf16.mxu0 0
        %930 = vmatpush1.bf16.msra.mxu0 %v853
        %931 = vmatprep.subr.bf16.mxu0 0
        %932 = vmatpush1.bf16.msra.mxu0 %v854
        %933 = vmatprep.subr.bf16.mxu0 0
        %934 = vmatpush1.bf16.msra.mxu0 %v855
        %935 = vmatprep.subr.bf16.mxu0 0
        %936 = vmatpush1.bf16.msra.mxu0 %v856
        %937 = vmatprep.mubr.bf16.mxu0 %v710
        %938 = vmatmul.mubr.bf16.gmra.mrb[0].mxu0 %v709
        %v939 = vpop.f32.mrb[0].mxu0
        %v940 = vadd.f32 0.0, %v939
        %v941 = vpop.f32.mrb[0].mxu0
        %v942 = vpop.f32.mrb[0].mxu0
        %v943 = vpop.f32.mrb[0].mxu0
        %944 = vdwg.mxu0
        %945 = vmatprep.subr.bf16.mxu0 0
        %946 = vmatpush1.bf16.msra.mxu0 %v857
        %947 = vmatprep.subr.bf16.mxu0 0
        %948 = vmatpush1.bf16.msra.mxu0 %v858
        %949 = vmatprep.subr.bf16.mxu0 0
        %950 = vmatpush1.bf16.msra.mxu0 %v859
        %951 = vmatprep.subr.bf16.mxu0 0
        %952 = vmatpush1.bf16.msra.mxu0 %v860
        %953 = vmatprep.subr.bf16.mxu0 0
        %954 = vmatpush1.bf16.msra.mxu0 %v861
        %955 = vmatprep.subr.bf16.mxu0 0
        %956 = vmatpush1.bf16.msra.mxu0 %v862
        %957 = vmatprep.subr.bf16.mxu0 0
        %958 = vmatpush1.bf16.msra.mxu0 %v863
        %959 = vmatprep.subr.bf16.mxu0 0
        %960 = vmatpush1.bf16.msra.mxu0 %v864
        %961 = vmatprep.subr.bf16.mxu0 0
        %962 = vmatpush1.bf16.msra.mxu0 %v865
        %963 = vmatprep.subr.bf16.mxu0 0
        %964 = vmatpush1.bf16.msra.mxu0 %v866
        %965 = vmatprep.subr.bf16.mxu0 0
        %966 = vmatpush1.bf16.msra.mxu0 %v867
        %967 = vmatprep.subr.bf16.mxu0 0
        %968 = vmatpush1.bf16.msra.mxu0 %v868
        %969 = vmatprep.subr.bf16.mxu0 0
        %970 = vmatpush1.bf16.msra.mxu0 %v869
        %971 = vmatprep.subr.bf16.mxu0 0
        %972 = vmatpush1.bf16.msra.mxu0 %v870
        %973 = vmatprep.subr.bf16.mxu0 0
        %974 = vmatpush1.bf16.msra.mxu0 %v871
        %975 = vmatprep.subr.bf16.mxu0 0
        %976 = vmatpush1.bf16.msra.mxu0 %v872
        %977 = vmatprep.mubr.bf16.mxu0 %v712
        %978 = vmatmul.mubr.bf16.gmra.mrb[0].mxu0 %v711
        %v979 = vpop.f32.mrb[0].mxu0
        %v980 = vadd.f32 %v940, %v979
        %v981 = vpop.f32.mrb[0].mxu0
        %v982 = vpop.f32.mrb[0].mxu0
        %v983 = vpop.f32.mrb[0].mxu0
        %984 = vdwg.mxu0
        %v985 = vadd.f32 %v708, %v980
        %986 = vst [vmem:[#allocation2] sm:$0xff] %v985
        // Predicated region
        $region57: #{tpu_custom_call.1} parent=39 // pred_check
          %p987 = pneg %p282
        $region58: #{tpu_custom_call.1} parent=39 // pred_check_branch
          %989 = sbr.rel (%p987) target = $region60
        $region59: #{tpu_custom_call.1} parent=39 // pred_region
          %v990 = vld [vmem:[#allocation2] sm:$0xff]
          %v991 = vld [vmem:[%s4] sm:$0x1]
          %v992 = vunpack.c.l.bf16 %v991
          %v993 = vlaneseq
          %v994 = vshrl.u32 %v993, 7
          %v995 = vsub.s32 0, %v994
          %v996 = vrot.slane %v992, %v995
          %v997 = vadd.f32 %v990, %v996
          %v998 = vpack.c.bf16 %v997, %v997
          %999 = vst [vmem:[%s280] sm:$0xf] %v998
        $region60: #{tpu_custom_call.1} parent=39 // pred_fallthru
          _
        %s1000 = sand.u32 %s153, 1
        %s1001 = scalar_lea.sflag [#allocation5], %s1000
        %s1002 = sand.u32 %s153, 1
        %s1003 = smul.addr %s1002, 4
        %s1004 = scalar_lea.vmem [#allocation9], %s1003
        // Predicated region
        $region61: #{tpu_custom_call.1} parent=39 // pred_check
          %p1005 = pneg %p163
        $region62: #{tpu_custom_call.1} parent=39 // pred_check_branch
          %1007 = sbr.rel (%p1005) target = $region64
        $region63: #{tpu_custom_call.1} parent=39 // pred_region
          %s1009 = ssub.s32 64, 64
          %1010 = vsyncadd %s1001, %s1009
          %s1011 = smul.addr %s27, 64
          %s1012 = scalar_lea.hbm %s5, %s1011
          %s1014 = sshll.u32 %s1004, 4
          %s1015 = int_to_ptr.vmem [resolvable:$true] %s1014
          %1017 = dma.vmem_to_hbm [thread:$0]  %s1015, 64, %s1012, %s1001
        $region64: #{tpu_custom_call.1} parent=39 // pred_fallthru
          _
      $region40: #{tpu_custom_call.1} parent=5 // pred_fallthru
        _
      %p1018 = scmp.le.s32.totalorder 2, %s18
      // Predicated region
      $region65: #{tpu_custom_call.1} parent=5 // pred_check
        %p1019 = pneg %p1018
      $region66: #{tpu_custom_call.1} parent=5 // pred_check_branch
        %1021 = sbr.rel (%p1019) target = $region68
      $region67: #{tpu_custom_call.1} parent=5 // pred_region
        %s1022 = ssub.s32 %s18, 2
        // Predicated region
        $region69: #{tpu_custom_call.1} parent=67 // pred_check
          %p1023 = pneg %p169
        $region70: #{tpu_custom_call.1} parent=67 // pred_check_branch
          %1025 = sbr.rel (%p1023) target = $region72
        $region71: #{tpu_custom_call.1} parent=67 // pred_region
          %s1026 = sand.u32 %s154, 1
          %s1027 = scalar_lea.sflag [#allocation5], %s1026
          %s1028 = sand.u32 %s154, 1
          %s1029 = smul.addr %s1028, 4
          %s1030 = scalar_lea.vmem [#allocation9], %s1029
          %1031 = dma.done %s1027, 64
        $region72: #{tpu_custom_call.1} parent=67 // pred_fallthru
          _
      $region68: #{tpu_custom_call.1} parent=5 // pred_fallthru
        _
    $region6: #{tpu_custom_call.1} parent=1 // loop_footer
      %s22 = sadd.s32 1, %s18
    $region7: #{tpu_custom_call.1} parent=1 // loop_footer_branch
      %17 = sbr.rel target = $region3
    $region8: #{tpu_custom_call.1} parent=1 // loop_exit
      _
    %1032 = vsyncpa [#allocation4], 1
    %s1033 = scalar_lea.sflag [#allocation4], 1
    %1034 = vsyncpa %s1033, 1
    %1035 = vsyncpa [#allocation7], 1
    %1036 = vsyncpa [#allocation5], 1
    %s1037 = scalar_lea.sflag [#allocation5], 1
    %1038 = vsyncpa %s1037, 1

</llo_original>
